<compile_context>
chip_gen: v6e
topology: v6e:2x2x1
jax: 0.10.0
libtpu: 0.0.40
codegen_flags: <defaults>
</compile_context>

<pallas_src>
import functools

import jax
import jax.numpy as jnp
from jax.experimental import pallas as pl
from jax.experimental.pallas import tpu as pltpu


_LANES = 512          # lane-dense output width (multiple of 128)
_MAX_TILE_ROWS = 1024  # 1024 x 512 f32 = 2 MiB per tile


def _round_up(a, b):
    return ((a + b - 1) // b) * b


def _dropout_kernel(seed_ref, x_ref, o_ref, *, keep_prob, tile_r, lanes):
    # Global element index of every lane in this tile.
    base = pl.program_id(0) * tile_r
    shape = (tile_r, lanes)
    row = base + jax.lax.broadcasted_iota(jnp.int32, shape, 0)
    col = jax.lax.broadcasted_iota(jnp.int32, shape, 1)
    idx = (row * lanes + col).astype(jnp.uint32)

    # Counter-based hash: mix the seed in, then murmur3 fmix32 avalanche.
    seed = seed_ref[0].astype(jnp.uint32)
    h = idx ^ (seed * jnp.uint32(0x9E3779B9))
    h = h ^ (h >> 16)
    h = h * jnp.uint32(0x85EBCA6B)
    h = h ^ (h >> 13)
    h = h * jnp.uint32(0xC2B2AE35)
    h = h ^ (h >> 16)

    # keep iff uniform u32 < keep_prob * 2^32  (integer threshold compare).
    thresh = jnp.uint32(min(int(keep_prob * (2 ** 32)), 2 ** 32 - 1))
    keep = h < thresh

    xv = x_ref[...]
    o_ref[...] = jnp.where(keep, xv * (1.0 / keep_prob), 0.0).astype(o_ref.dtype)


def dropout(x, seed, p=0.5, training=True):
    """Inverted dropout. x: float array (any shape). seed: python int.

    NOTE: the caller must vary `seed` per training step, otherwise the same
    mask is applied every call.
    """
    if (not training) or p == 0.0:
        return x
    if p >= 1.0:
        # Standard dropout semantics (all dropped). The literal PyTorch module
        # would produce NaN (0/0) here; we return zeros instead.
        return jnp.zeros_like(x)
    keep_prob = 1.0 - p

    orig_shape = x.shape
    orig_dtype = x.dtype
    total = int(x.size)

    # Flatten to a lane-dense 2D slab (rows, _LANES); pad the tail.
    rows = max(1, pl.cdiv(total, _LANES))
    rows8 = _round_up(rows, 8)
    tile_r = min(_MAX_TILE_ROWS, rows8)
    padded_rows = _round_up(rows8, tile_r)
    padded_total = padded_rows * _LANES

    x_flat = x.reshape(-1)
    if padded_total != total:
        x_flat = jnp.pad(x_flat, (0, padded_total - total))
    x2 = x_flat.reshape(padded_rows, _LANES)

    seed_arr = jnp.asarray([seed], dtype=jnp.int32)
    grid = (padded_rows // tile_r,)

    kernel = functools.partial(
        _dropout_kernel, keep_prob=keep_prob, tile_r=tile_r, lanes=_LANES)

    out2 = pl.pallas_call(
        kernel,
        out_shape=jax.ShapeDtypeStruct((padded_rows, _LANES), orig_dtype),
        grid=grid,
        in_specs=[
            pl.BlockSpec(memory_space=pltpu.MemorySpace.SMEM),   # seed scalar
            pl.BlockSpec((tile_r, _LANES), lambda i: (i, 0)),    # x tile
        ],
        out_specs=pl.BlockSpec((tile_r, _LANES), lambda i: (i, 0)),
        compiler_params=pltpu.CompilerParams(
            dimension_semantics=("parallel",)),
    )(seed_arr, x2)

    return out2.reshape(-1)[:total].reshape(orig_shape)


if __name__ == "__main__":
    key = jax.random.PRNGKey(0)
    batch, hidden = 16, 128
    x = jax.random.normal(key, (batch, hidden), dtype=jnp.float32)

    p = 0.5
    y = jax.block_until_ready(dropout(x, seed=1234, p=p, training=True))

    # Surviving elements are exactly x / keep_prob, dropped ones are 0.
    keep_prob = 1.0 - p
    mask = (y != 0.0)
    assert jnp.allclose(jnp.where(mask, y * keep_prob, 0.0),
                        jnp.where(mask, x, 0.0), atol=1e-5)

    # Drop fraction should be roughly p.
    drop_frac = 1.0 - float(jnp.mean(mask.astype(jnp.float32)))
    assert 0.25 < drop_frac < 0.75, drop_frac

    # Eval mode is identity.
    y_eval = jax.block_until_ready(dropout(x, seed=1234, p=p, training=False))
    assert jnp.array_equal(y_eval, x)

    print("KERNEL_OK")
</pallas_src>

<mosaic_0001>
module attributes {stable_mosaic.version = 11 : i64} {
  func.func @_dropout_kernel(%arg0: i32, %arg1: memref<1xi32, #tpu.memory_space<smem>>, %arg2: memref<8x512xf32, #tpu.memory_space<vmem>>, %arg3: memref<8x512xf32, #tpu.memory_space<vmem>>) attributes {dimension_semantics = [#tpu.dimension_semantics<parallel>], iteration_bounds = array<i64: 1>, scalar_prefetch = 0 : i64, scratch_operands = 0 : i64, tpu.core_type = #tpu.core_type<tc>, window_params = [{transform_indices = @transform_0, window_bounds = array<i64: 1>}, {transform_indices = @transform_1, window_bounds = array<i64: 8, 512>}, {transform_indices = @transform_2, window_bounds = array<i64: 8, 512>}]} {
    %c8_i32 = arith.constant 8 : i32
    %0 = arith.muli %arg0, %c8_i32 : i32
    %1 = tpu.iota {dimensions = array<i32: 0>} : vector<8x512xi32>
    %2 = vector.broadcast %0 : i32 to vector<8x512xi32>
    %3 = arith.addi %2, %1 : vector<8x512xi32>
    %4 = tpu.iota {dimensions = array<i32: 1>} : vector<8x512xi32>
    %c512_i32 = arith.constant 512 : i32
    %5 = vector.broadcast %c512_i32 : i32 to vector<8x512xi32>
    %6 = arith.muli %3, %5 : vector<8x512xi32>
    %7 = arith.addi %6, %4 : vector<8x512xi32>
    %c0 = arith.constant 0 : index
    %8 = memref.load %arg1[%c0] : memref<1xi32, #tpu.memory_space<smem>>
    %c-1640531527_i32 = arith.constant -1640531527 : i32
    %9 = arith.muli %8, %c-1640531527_i32 : i32
    %10 = vector.broadcast %9 : i32 to vector<8x512xi32>
    %11 = arith.xori %7, %10 : vector<8x512xi32>
    %c16_i32 = arith.constant 16 : i32
    %12 = vector.broadcast %c16_i32 : i32 to vector<8x512xi32>
    %13 = arith.shrui %11, %12 : vector<8x512xi32>
    %14 = arith.xori %11, %13 : vector<8x512xi32>
    %c-2048144789_i32 = arith.constant -2048144789 : i32
    %15 = vector.broadcast %c-2048144789_i32 : i32 to vector<8x512xi32>
    %16 = arith.muli %14, %15 : vector<8x512xi32>
    %c13_i32 = arith.constant 13 : i32
    %17 = vector.broadcast %c13_i32 : i32 to vector<8x512xi32>
    %18 = arith.shrui %16, %17 : vector<8x512xi32>
    %19 = arith.xori %16, %18 : vector<8x512xi32>
    %c-1028477387_i32 = arith.constant -1028477387 : i32
    %20 = vector.broadcast %c-1028477387_i32 : i32 to vector<8x512xi32>
    %21 = arith.muli %19, %20 : vector<8x512xi32>
    %c16_i32_0 = arith.constant 16 : i32
    %22 = vector.broadcast %c16_i32_0 : i32 to vector<8x512xi32>
    %23 = arith.shrui %21, %22 : vector<8x512xi32>
    %24 = arith.xori %21, %23 : vector<8x512xi32>
    %c-2147483648_i32 = arith.constant -2147483648 : i32
    %25 = vector.broadcast %c-2147483648_i32 : i32 to vector<8x512xi32>
    %26 = arith.cmpi ult, %24, %25 : vector<8x512xi32>
    %c0_1 = arith.constant 0 : index
    %c0_2 = arith.constant 0 : index
    %27 = vector.load %arg2[%c0_1, %c0_2] : memref<8x512xf32, #tpu.memory_space<vmem>>, vector<8x512xf32>
    %cst = arith.constant 2.000000e+00 : f32
    %28 = vector.broadcast %cst : f32 to vector<8x512xf32>
    %29 = arith.mulf %27, %28 : vector<8x512xf32>
    %cst_3 = arith.constant 0.000000e+00 : f32
    %30 = vector.broadcast %cst_3 : f32 to vector<8x512xf32>
    %31 = arith.select %26, %29, %30 : vector<8x512xi1>, vector<8x512xf32>
    %c0_4 = arith.constant 0 : index
    %c0_5 = arith.constant 0 : index
    %32 = vector.load %arg3[%c0_4, %c0_5] : memref<8x512xf32, #tpu.memory_space<vmem>>, vector<8x512xf32>
    tpu.vector_store %arg3[%c0_4, %c0_5], %31 {strides = array<i32>} : memref<8x512xf32, #tpu.memory_space<vmem>>, vector<8x512xf32>,
    return
  }
  func.func @transform_0(%arg0: i32) -> i32 {
    %c0_i32 = arith.constant 0 : i32
    %c0_i32_0 = arith.constant 0 : i32
    return %c0_i32 : i32
  }
  func.func @transform_1(%arg0: i32) -> (i32, i32) {
    %c0_i32 = arith.constant 0 : i32
    %c0_i32_0 = arith.constant 0 : i32
    return %arg0, %c0_i32 : i32, i32
  }
  func.func @transform_2(%arg0: i32) -> (i32, i32) {
    %c0_i32 = arith.constant 0 : i32
    %c0_i32_0 = arith.constant 0 : i32
    return %arg0, %c0_i32 : i32, i32
  }
}

</mosaic_0001>

<llo_original>
// kernel: tpu_custom_call.1
$region0: #{tpu_custom_call.1}
  #allocation0 [shape = 'u32[]', space=smem, size = 0x4, offset = 0x4, fixed_abs, tag = 'smem constant byte address 0x4 - core index']
  #allocation1 [shape = 'u32[144,128]{1,0:T(1,128)}', space=vmem, size = 0x12000, scoped, tag = 'internal scratch']
  #allocation2 [shape = 's32[1]{0:T(128)S(6)}', space=smem, size = 0x200, scoped, tag = 'scoped memory for tpu_custom_call.1']
  %s0 = inlined_call_operand.<no memory space> [shape: s32[1], index: 0, kind: input, shape index: {}]
  %s1 = inlined_call_operand.hbm [shape: f32[8,512], index: 1, kind: input, shape index: {}]
  %s2 = inlined_call_operand.hbm [shape: f32[8,512], index: 2, kind: output, shape index: {}]
  %s3 = sld [smem:[#allocation0]]
  $region22: #{tpu_custom_call.1} parent=0
    _
  %s5 = ssub.s32 1, %s3
  %s6 = scalar_select 0, %s5, %s3
  %7 = sst [smem:[#allocation2]] %s0
  $region1: #{tpu_custom_call.1} parent=0
    #allocation3 [shape = 'u8[16384]{0}', space=vmem, size = 0x4000, scoped, tag = 'input window, operand 1, single buffered']
    #allocation4 [shape = 's32[1]{0}', space=sflag, size = 0x4, scoped, tag = 'scoped memory for tpu_custom_call.1']
    #allocation5 [shape = 's32[1]{0}', space=sflag, size = 0x4, scoped, tag = 'scoped memory for tpu_custom_call.1']
    #allocation6 [shape = 'u8[16384]{0}', space=vmem, size = 0x4000, scoped, tag = 'output window, operand 0, single buffered']
    %8 = vsyncpa [#allocation4], 0
    %9 = vsyncpa [#allocation5], 0
    // Predicated region
    $region2: #{tpu_custom_call.1} parent=1 // pred_check
      _
    $region3: #{tpu_custom_call.1} parent=1 // pred_check_branch
      %11 = sbr.rel (0) target = $region5
    $region4: #{tpu_custom_call.1} parent=1 // pred_region
      _
    $region5: #{tpu_custom_call.1} parent=1 // pred_fallthru
      _
    // Predicated region
    $region6: #{tpu_custom_call.1} parent=1 // pred_check
      _
    $region7: #{tpu_custom_call.1} parent=1 // pred_check_branch
      %13 = sbr.rel (0) target = $region9
    $region8: #{tpu_custom_call.1} parent=1 // pred_region
      %s15 = ssub.s32 512, 512
      %16 = vsyncadd [#allocation4], %s15
      %s18 = sshll.u32 [#allocation3], 4
      %s19 = int_to_ptr.vmem [resolvable:$true] %s18
      %21 = dma.hbm_to_vmem [thread:$0]  %s1, 512, %s19, [#allocation4]
    $region9: #{tpu_custom_call.1} parent=1 // pred_fallthru
      _
    // Predicated region
    $region10: #{tpu_custom_call.1} parent=1 // pred_check
      _
    $region11: #{tpu_custom_call.1} parent=1 // pred_check_branch
      %23 = sbr.rel (0) target = $region13
    $region12: #{tpu_custom_call.1} parent=1 // pred_region
      %24 = dma.done [#allocation4], 512
    $region13: #{tpu_custom_call.1} parent=1 // pred_fallthru
      _
    %s25 = smul.u32 0, 8
    %v26 = vlaneseq
    %v27 = vshrl.u32 %v26, 7
    %v28 = vstv %s25
    %v29 = vadd.s32 %v28, %v27
    %v30 = vlaneseq
    %v31 = vand.u32 %v30, 127
    %v32 = vadd.s32 %v31, 128
    %v33 = vadd.s32 %v31, 256
    %v34 = vadd.s32 %v31, 384
    %v35 = vmul.u32 %v29, 512
    %v36 = vadd.s32 %v35, %v31
    %v37 = vadd.s32 %v35, %v32
    %v38 = vadd.s32 %v35, %v33
    %v39 = vadd.s32 %v35, %v34
    %s40 = sld [smem:[#allocation2]]
    %s41 = smul.u32 %s40, 2654435769
    %v42 = vstv %s41
    %v43 = vxor.u32 %v36, %v42
    %v44 = vxor.u32 %v37, %v42
    %v45 = vxor.u32 %v38, %v42
    %v46 = vxor.u32 %v39, %v42
    %v47 = vshrl.u32 %v43, 16
    %v48 = vshrl.u32 %v44, 16
    %v49 = vshrl.u32 %v45, 16
    %v50 = vshrl.u32 %v46, 16
    %v51 = vxor.u32 %v43, %v47
    %v52 = vxor.u32 %v44, %v48
    %v53 = vxor.u32 %v45, %v49
    %v54 = vxor.u32 %v46, %v50
    %v55 = vmul.u32 %v51, 2246822507
    %v56 = vmul.u32 %v52, 2246822507
    %v57 = vmul.u32 %v53, 2246822507
    %v58 = vmul.u32 %v54, 2246822507
    %v59 = vshrl.u32 %v55, 13
    %v60 = vshrl.u32 %v56, 13
    %v61 = vshrl.u32 %v57, 13
    %v62 = vshrl.u32 %v58, 13
    %v63 = vxor.u32 %v55, %v59
    %v64 = vxor.u32 %v56, %v60
    %v65 = vxor.u32 %v57, %v61
    %v66 = vxor.u32 %v58, %v62
    %v67 = vmul.u32 %v63, 3266489909
    %v68 = vmul.u32 %v64, 3266489909
    %v69 = vmul.u32 %v65, 3266489909
    %v70 = vmul.u32 %v66, 3266489909
    %v71 = vshrl.u32 %v67, 16
    %v72 = vshrl.u32 %v68, 16
    %v73 = vshrl.u32 %v69, 16
    %v74 = vshrl.u32 %v70, 16
    %v75 = vxor.u32 %v67, %v71
    %v76 = vxor.u32 %v68, %v72
    %v77 = vxor.u32 %v69, %v73
    %v78 = vxor.u32 %v70, %v74
    %vm79 = vcmp.lt.u32.totalorder %v75, 2147483648
    %vm80 = vcmp.lt.u32.totalorder %v76, 2147483648
    %vm81 = vcmp.lt.u32.totalorder %v77, 2147483648
    %vm82 = vcmp.lt.u32.totalorder %v78, 2147483648
    %v83 = vld [vmem:[#allocation3] sm:$0xff]
    %v84 = vld [vmem:[#allocation3 + $0x8] sm:$0xff]
    %v85 = vld [vmem:[#allocation3 + $0x10] sm:$0xff]
    %v86 = vld [vmem:[#allocation3 + $0x18] sm:$0xff]
    %v87 = vmul.f32 %v83, 2.0
    %v88 = vmul.f32 %v84, 2.0
    %v89 = vmul.f32 %v85, 2.0
    %v90 = vmul.f32 %v86, 2.0
    %v91 = vsel %vm79, %v87, 0.0
    %v92 = vsel %vm80, %v88, 0.0
    %v93 = vsel %vm81, %v89, 0.0
    %v94 = vsel %vm82, %v90, 0.0
    %95 = vst [vmem:[#allocation6] sm:$0xff] %v91
    %96 = vst [vmem:[#allocation6 + $0x8] sm:$0xff] %v92
    %97 = vst [vmem:[#allocation6 + $0x10] sm:$0xff] %v93
    %98 = vst [vmem:[#allocation6 + $0x18] sm:$0xff] %v94
    // Predicated region
    $region14: #{tpu_custom_call.1} parent=1 // pred_check
      _
    $region15: #{tpu_custom_call.1} parent=1 // pred_check_branch
      %100 = sbr.rel (0) target = $region17
    $region16: #{tpu_custom_call.1} parent=1 // pred_region
      %s102 = ssub.s32 512, 512
      %103 = vsyncadd [#allocation5], %s102
      %s105 = sshll.u32 [#allocation6], 4
      %s106 = int_to_ptr.vmem [resolvable:$true] %s105
      %108 = dma.vmem_to_hbm [thread:$0]  %s106, 512, %s2, [#allocation5]
    $region17: #{tpu_custom_call.1} parent=1 // pred_fallthru
      _
    // Predicated region
    $region18: #{tpu_custom_call.1} parent=1 // pred_check
      _
    $region19: #{tpu_custom_call.1} parent=1 // pred_check_branch
      %110 = sbr.rel (0) target = $region21
    $region20: #{tpu_custom_call.1} parent=1 // pred_region
      %111 = dma.done [#allocation5], 512
    $region21: #{tpu_custom_call.1} parent=1 // pred_fallthru
      _
    %112 = vsyncpa [#allocation4], 1
    %113 = vsyncpa [#allocation5], 1

</llo_original>
